<compile_context>
chip_gen: v7x
topology: tpu7x:2x2x1
jax: 0.10.0
libtpu: 0.0.40
codegen_flags: <defaults>
</compile_context>

<pallas_src>
import jax
import jax.numpy as jnp
from jax.experimental import pallas as pl
from jax.experimental.pallas import tpu as pltpu

IN_DIM = 768
HID = 50
OUT_DIM = 37

# Lane-dense (128-wide) padded dims.
HID_PAD = 128
OUT_PAD = 128

TB = 512          # batch tile for the gridded (large-B) path
GRID_MIN_B = 1024 # below this, use a single full-block call (overhead bound)


def mlp_kernel(x_ref, w1_ref, b1_ref, w2_ref, b2_ref, w3_ref, b3_ref, o_ref):
    # Layer 1: Linear(768 -> HID_PAD) + ReLU.  MXU matmul, f32 accumulation;
    # bias add / ReLU in f32 (v5e-friendly).
    h = jnp.dot(x_ref[...], w1_ref[...], preferred_element_type=jnp.float32)
    h = jnp.maximum(h + b1_ref[...], 0.0)
    # Layer 2: Linear(HID_PAD -> HID_PAD) + ReLU.
    h = jnp.dot(h.astype(w2_ref.dtype), w2_ref[...],
                preferred_element_type=jnp.float32)
    h = jnp.maximum(h + b2_ref[...], 0.0)
    # Layer 3: Linear(HID_PAD -> OUT_PAD), no activation.
    h = jnp.dot(h.astype(w3_ref.dtype), w3_ref[...],
                preferred_element_type=jnp.float32)
    o_ref[...] = (h + b3_ref[...]).astype(o_ref.dtype)


def _pad_to(a, shape):
    """Zero-pad a 2D array up to `shape` (padding preserves the math)."""
    out = jnp.zeros(shape, a.dtype)
    return out.at[: a.shape[0], : a.shape[1]].set(a)


def mlp_forward(x, params, *, compute_dtype=jnp.float32, tb=TB):
    """x: (B, 768). params: dict of w1,b1,w2,b2,w3,b3 (weights (in,out), f32).

    compute_dtype: jnp.float32 (exact) or jnp.bfloat16 (bf16 MXU inputs with
    f32 accumulation — ~2x less HBM traffic on x).
    """
    B = x.shape[0]
    wdt = compute_dtype

    # Lane-dense, zero-padded weights / biases. Biases stay f32.
    w1 = _pad_to(params["w1"], (IN_DIM, HID_PAD)).astype(wdt)
    w2 = _pad_to(params["w2"], (HID_PAD, HID_PAD)).astype(wdt)
    w3 = _pad_to(params["w3"], (HID_PAD, OUT_PAD)).astype(wdt)
    b1 = _pad_to(params["b1"], (1, HID_PAD))
    b2 = _pad_to(params["b2"], (1, HID_PAD))
    b3 = _pad_to(params["b3"], (1, OUT_PAD))
    x = x.astype(wdt)

    args = (x, w1, b1, w2, b2, w3, b3)

    if B < GRID_MIN_B:
        # Tiny batch: launch-overhead bound -> single full-block call, no grid.
        full = lambda a: pl.BlockSpec(a.shape, lambda: (0,) * a.ndim)
        out = pl.pallas_call(
            mlp_kernel,
            out_shape=jax.ShapeDtypeStruct((B, OUT_PAD), jnp.float32),
            grid=(),
            in_specs=[full(a) for a in args],
            out_specs=pl.BlockSpec((B, OUT_PAD), lambda: (0, 0)),
        )(*args)
        return out[:, :OUT_DIM]

    # Large batch: tile the batch dim. x / out are pipelined (double-buffered
    # DMA); weights and biases use constant index maps so they remain resident
    # in VMEM across all grid steps.
    n_tiles = pl.cdiv(B, tb)
    resident = lambda a: pl.BlockSpec(a.shape, lambda i: (0,) * a.ndim)
    out = pl.pallas_call(
        mlp_kernel,
        out_shape=jax.ShapeDtypeStruct((B, OUT_PAD), jnp.float32),
        grid=(n_tiles,),
        in_specs=[
            pl.BlockSpec((tb, IN_DIM), lambda i: (i, 0)),  # x: batch-tiled
            resident(w1), resident(b1),
            resident(w2), resident(b2),
            resident(w3), resident(b3),
        ],
        out_specs=pl.BlockSpec((tb, OUT_PAD), lambda i: (i, 0)),
        compiler_params=pltpu.CompilerParams(
            dimension_semantics=("parallel",),  # shard batch tiles across TCs (v7x)
            vmem_limit_bytes=32 << 20,          # modest budget; fits v7x's 64 MiB
        ),
    )(*args)
    return out[:, :OUT_DIM]


def init_params(key, hid_size=HID):
    """Deterministic init mimicking nn.Linear's U(-1/sqrt(fan_in), 1/sqrt(fan_in))."""
    keys = jax.random.split(key, 6)

    def linear(kw, kb, fan_in, fan_out):
        bound = 1.0 / jnp.sqrt(fan_in)
        w = jax.random.uniform(kw, (fan_in, fan_out), jnp.float32, -bound, bound)
        b = jax.random.uniform(kb, (1, fan_out), jnp.float32, -bound, bound)
        return w, b

    w1, b1 = linear(keys[0], keys[1], IN_DIM, hid_size)
    w2, b2 = linear(keys[2], keys[3], hid_size, hid_size)
    w3, b3 = linear(keys[4], keys[5], hid_size, OUT_DIM)
    return {"w1": w1, "b1": b1, "w2": w2, "b2": b2, "w3": w3, "b3": b3}


def mlp_reference(x, p):
    h = jnp.maximum(x @ p["w1"] + p["b1"], 0.0)
    h = jnp.maximum(h @ p["w2"] + p["b2"], 0.0)
    return h @ p["w3"] + p["b3"]


def mlp_reference_lowp(x, p, dtype):
    """Reference applying the same low-precision input cast (f32 accumulate)."""
    f = jnp.float32
    h = jnp.dot(x.astype(dtype), p["w1"].astype(dtype), preferred_element_type=f)
    h = jnp.maximum(h + p["b1"], 0.0)
    h = jnp.dot(h.astype(dtype), p["w2"].astype(dtype), preferred_element_type=f)
    h = jnp.maximum(h + p["b2"], 0.0)
    h = jnp.dot(h.astype(dtype), p["w3"].astype(dtype), preferred_element_type=f)
    return h + p["b3"]


if __name__ == "__main__":
    key = jax.random.PRNGKey(0)
    k_x, k_p, k_x2 = jax.random.split(key, 3)

    params = init_params(k_p, hid_size=HID)

    # 1) Tiny batch (single full-block path), f32 — exact check vs reference.
    B_small = 8
    x_small = jax.random.normal(k_x, (B_small, IN_DIM), dtype=jnp.float32)
    out_small = jax.block_until_ready(mlp_forward(x_small, params))
    ref_small = mlp_reference(x_small, params)
    assert out_small.shape == (B_small, OUT_DIM), out_small.shape
    assert jnp.allclose(out_small, ref_small, atol=1e-4, rtol=1e-4), \
        "small-batch mismatch vs JAX reference"

    # 2) Larger batch (gridded path, partial last tile), f32.
    B_big = 1100
    x_big = jax.random.normal(k_x2, (B_big, IN_DIM), dtype=jnp.float32)
    out_big = jax.block_until_ready(mlp_forward(x_big, params))
    ref_big = mlp_reference(x_big, params)
    assert out_big.shape == (B_big, OUT_DIM), out_big.shape
    assert jnp.allclose(out_big, ref_big, atol=1e-4, rtol=1e-4), \
        "gridded-batch mismatch vs JAX reference"

    # 3) bf16-input / f32-accumulate path (bandwidth optimization), checked
    #    against a reference that applies the same input cast.
    out_bf16 = jax.block_until_ready(
        mlp_forward(x_big, params, compute_dtype=jnp.bfloat16))
    ref_bf16 = mlp_reference_lowp(x_big, params, jnp.bfloat16)
    assert jnp.allclose(out_bf16, ref_bf16, atol=2e-2, rtol=2e-2), \
        "bf16 path mismatch vs matched-precision reference"

    print("KERNEL_OK")
</pallas_src>

<mosaic_0001>
module attributes {stable_mosaic.version = 11 : i64} {
  func.func @mlp_kernel(%arg0: memref<8x768xf32, #tpu.memory_space<vmem>>, %arg1: memref<768x128xf32, #tpu.memory_space<vmem>>, %arg2: memref<1x128xf32, #tpu.memory_space<vmem>>, %arg3: memref<128x128xf32, #tpu.memory_space<vmem>>, %arg4: memref<1x128xf32, #tpu.memory_space<vmem>>, %arg5: memref<128x128xf32, #tpu.memory_space<vmem>>, %arg6: memref<1x128xf32, #tpu.memory_space<vmem>>, %arg7: memref<8x128xf32, #tpu.memory_space<vmem>>) attributes {dimension_semantics = [], scalar_prefetch = 0 : i64, scratch_operands = 0 : i64, tpu.core_type = #tpu.core_type<tc>} {
    %c0 = arith.constant 0 : index
    %c0_0 = arith.constant 0 : index
    %0 = vector.load %arg0[%c0, %c0_0] : memref<8x768xf32, #tpu.memory_space<vmem>>, vector<8x768xf32>
    %c0_1 = arith.constant 0 : index
    %c0_2 = arith.constant 0 : index
    %1 = vector.load %arg1[%c0_1, %c0_2] : memref<768x128xf32, #tpu.memory_space<vmem>>, vector<768x128xf32>
    %cst = arith.constant dense<0.000000e+00> : vector<8x128xf32>
    %2 = tpu.matmul %0, %1, %cst {dimension_numbers = #tpu.dot_dimension_numbers<[1], [0], [0], [1], [0, 0, 1, 1], [], []>} : vector<8x768xf32>, vector<768x128xf32>, vector<8x128xf32> -> vector<8x128xf32>
    %c0_3 = arith.constant 0 : index
    %c0_4 = arith.constant 0 : index
    %3 = vector.load %arg2[%c0_3, %c0_4] : memref<1x128xf32, #tpu.memory_space<vmem>>, vector<1x128xf32>
    %4 = vector.broadcast %3 : vector<1x128xf32> to vector<8x128xf32>
    %5 = arith.addf %2, %4 : vector<8x128xf32>
    %cst_5 = arith.constant 0.000000e+00 : f32
    %6 = vector.broadcast %cst_5 : f32 to vector<8x128xf32>
    %7 = arith.maximumf %5, %6 : vector<8x128xf32>
    %c0_6 = arith.constant 0 : index
    %c0_7 = arith.constant 0 : index
    %8 = vector.load %arg3[%c0_6, %c0_7] : memref<128x128xf32, #tpu.memory_space<vmem>>, vector<128x128xf32>
    %cst_8 = arith.constant dense<0.000000e+00> : vector<8x128xf32>
    %9 = tpu.matmul %7, %8, %cst_8 {dimension_numbers = #tpu.dot_dimension_numbers<[1], [0], [0], [1], [0, 0, 1, 1], [], []>} : vector<8x128xf32>, vector<128x128xf32>, vector<8x128xf32> -> vector<8x128xf32>
    %c0_9 = arith.constant 0 : index
    %c0_10 = arith.constant 0 : index
    %10 = vector.load %arg4[%c0_9, %c0_10] : memref<1x128xf32, #tpu.memory_space<vmem>>, vector<1x128xf32>
    %11 = vector.broadcast %10 : vector<1x128xf32> to vector<8x128xf32>
    %12 = arith.addf %9, %11 : vector<8x128xf32>
    %cst_11 = arith.constant 0.000000e+00 : f32
    %13 = vector.broadcast %cst_11 : f32 to vector<8x128xf32>
    %14 = arith.maximumf %12, %13 : vector<8x128xf32>
    %c0_12 = arith.constant 0 : index
    %c0_13 = arith.constant 0 : index
    %15 = vector.load %arg5[%c0_12, %c0_13] : memref<128x128xf32, #tpu.memory_space<vmem>>, vector<128x128xf32>
    %cst_14 = arith.constant dense<0.000000e+00> : vector<8x128xf32>
    %16 = tpu.matmul %14, %15, %cst_14 {dimension_numbers = #tpu.dot_dimension_numbers<[1], [0], [0], [1], [0, 0, 1, 1], [], []>} : vector<8x128xf32>, vector<128x128xf32>, vector<8x128xf32> -> vector<8x128xf32>
    %c0_15 = arith.constant 0 : index
    %c0_16 = arith.constant 0 : index
    %17 = vector.load %arg6[%c0_15, %c0_16] : memref<1x128xf32, #tpu.memory_space<vmem>>, vector<1x128xf32>
    %18 = vector.broadcast %17 : vector<1x128xf32> to vector<8x128xf32>
    %19 = arith.addf %16, %18 : vector<8x128xf32>
    %c0_17 = arith.constant 0 : index
    %c0_18 = arith.constant 0 : index
    %20 = vector.load %arg7[%c0_17, %c0_18] : memref<8x128xf32, #tpu.memory_space<vmem>>, vector<8x128xf32>
    tpu.vector_store %arg7[%c0_17, %c0_18], %19 {strides = array<i32>} : memref<8x128xf32, #tpu.memory_space<vmem>>, vector<8x128xf32>,
    return
  }
}

</mosaic_0001>

<llo_original>
// kernel: tpu_custom_call.1
$region0: #{tpu_custom_call.1}
  #allocation0 [shape = 'u32[]', space=smem, size = 0x4, offset = 0x4, fixed_abs, tag = 'smem constant byte address 0x4 - core index']
  #allocation1 [shape = 'u32[144,128]{1,0:T(1,128)}', space=vmem, size = 0x12000, scoped, tag = 'internal scratch']
  %s0 = inlined_call_operand.hbm [shape: f32[8,768], index: 0, kind: input, shape index: {}]
  %s1 = inlined_call_operand.hbm [shape: f32[768,128], index: 1, kind: input, shape index: {}]
  %s2 = inlined_call_operand.vmem [shape: f32[1,128], index: 2, kind: input, shape index: {}]
  %s3 = inlined_call_operand.hbm [shape: f32[128,128], index: 3, kind: input, shape index: {}]
  %s4 = inlined_call_operand.vmem [shape: f32[1,128], index: 4, kind: input, shape index: {}]
  %s5 = inlined_call_operand.hbm [shape: f32[128,128], index: 5, kind: input, shape index: {}]
  %s6 = inlined_call_operand.vmem [shape: f32[1,128], index: 6, kind: input, shape index: {}]
  %s7 = inlined_call_operand.hbm [shape: f32[8,128], index: 7, kind: output, shape index: {}]
  %s8 = sld [smem:[#allocation0]]
  $region54: #{tpu_custom_call.1} parent=0
    _
  %s10 = ssub.s32 1, %s8
  %s11 = scalar_select 0, %s10, %s8
  $region1: #{tpu_custom_call.1} parent=0
    #allocation2 [shape = 'u8[24576]{0}', space=vmem, size = 0x6000, scoped, tag = 'input window, operand 0, single buffered']
    #allocation3 [shape = 's32[1]{0}', space=sflag, size = 0x4, scoped, tag = 'scoped memory for tpu_custom_call.1']
    #allocation4 [shape = 's32[1]{0}', space=sflag, size = 0x4, scoped, tag = 'scoped memory for tpu_custom_call.1']
    #allocation5 [shape = 'u8[393216]{0}', space=vmem, size = 0x60000, scoped, tag = 'input window, operand 1, single buffered']
    #allocation6 [shape = 's32[1]{0}', space=sflag, size = 0x4, scoped, tag = 'scoped memory for tpu_custom_call.1']
    #allocation7 [shape = 'u8[65536]{0}', space=vmem, size = 0x10000, scoped, tag = 'input window, operand 3, single buffered']
    #allocation8 [shape = 'u8[65536]{0}', space=vmem, size = 0x10000, scoped, tag = 'input window, operand 5, single buffered']
    #allocation9 [shape = 's32[1]{0}', space=sflag, size = 0x4, scoped, tag = 'scoped memory for tpu_custom_call.1']
    #allocation10 [shape = 'u8[4096]{0}', space=vmem, size = 0x1000, scoped, tag = 'output window, operand 0, single buffered']
    %12 = vsyncpa [#allocation3], 0
    %13 = vsyncpa [#allocation6], 0
    %14 = vsyncpa [#allocation9], 0
    %15 = vsyncpa [#allocation4], 0
    // Predicated region
    $region2: #{tpu_custom_call.1} parent=1 // pred_check
      _
    $region3: #{tpu_custom_call.1} parent=1 // pred_check_branch
      %17 = sbr.rel (0) target = $region5
    $region4: #{tpu_custom_call.1} parent=1 // pred_region
      %s19 = ssub.s32 768, 768
      %20 = vsyncadd [#allocation3], %s19
      %s22 = sshll.u32 [#allocation2], 4
      %s23 = int_to_ptr.vmem [resolvable:$true] %s22
      %25 = dma.hbm_to_vmem [thread:$0]  %s0, 768, %s23, [#allocation3]
    $region5: #{tpu_custom_call.1} parent=1 // pred_fallthru
      _
    // Predicated region
    $region6: #{tpu_custom_call.1} parent=1 // pred_check
      _
    $region7: #{tpu_custom_call.1} parent=1 // pred_check_branch
      %27 = sbr.rel (0) target = $region9
    $region8: #{tpu_custom_call.1} parent=1 // pred_region
      %s29 = ssub.s32 12288, 12288
      %30 = vsyncadd [#allocation6], %s29
      %s31 = sshll.u32 [#allocation5], 4
      %s32 = int_to_ptr.vmem [resolvable:$true] %s31
      %37 = dma.hbm_to_vmem [thread:$0]  %s1, 12288, %s32, [#allocation6], 128, 128, 8
    $region9: #{tpu_custom_call.1} parent=1 // pred_fallthru
      _
    // Predicated region
    $region10: #{tpu_custom_call.1} parent=1 // pred_check
      _
    $region11: #{tpu_custom_call.1} parent=1 // pred_check_branch
      %39 = sbr.rel (0) target = $region13
    $region12: #{tpu_custom_call.1} parent=1 // pred_region
      _
    $region13: #{tpu_custom_call.1} parent=1 // pred_fallthru
      _
    // Predicated region
    $region14: #{tpu_custom_call.1} parent=1 // pred_check
      _
    $region15: #{tpu_custom_call.1} parent=1 // pred_check_branch
      %41 = sbr.rel (0) target = $region17
    $region16: #{tpu_custom_call.1} parent=1 // pred_region
      %s43 = ssub.s32 2048, 2048
      %44 = vsyncadd [#allocation6], %s43
      %s45 = sshll.u32 [#allocation7], 4
      %s46 = int_to_ptr.vmem [resolvable:$true] %s45
      %51 = dma.hbm_to_vmem [thread:$0]  %s3, 2048, %s46, [#allocation6], 128, 128, 8
    $region17: #{tpu_custom_call.1} parent=1 // pred_fallthru
      _
    // Predicated region
    $region18: #{tpu_custom_call.1} parent=1 // pred_check
      _
    $region19: #{tpu_custom_call.1} parent=1 // pred_check_branch
      %53 = sbr.rel (0) target = $region21
    $region20: #{tpu_custom_call.1} parent=1 // pred_region
      _
    $region21: #{tpu_custom_call.1} parent=1 // pred_fallthru
      _
    // Predicated region
    $region22: #{tpu_custom_call.1} parent=1 // pred_check
      _
    $region23: #{tpu_custom_call.1} parent=1 // pred_check_branch
      %55 = sbr.rel (0) target = $region25
    $region24: #{tpu_custom_call.1} parent=1 // pred_region
      %s57 = ssub.s32 2048, 2048
      %58 = vsyncadd [#allocation9], %s57
      %s59 = sshll.u32 [#allocation8], 4
      %s60 = int_to_ptr.vmem [resolvable:$true] %s59
      %65 = dma.hbm_to_vmem [thread:$0]  %s5, 2048, %s60, [#allocation9], 128, 128, 8
    $region25: #{tpu_custom_call.1} parent=1 // pred_fallthru
      _
    // Predicated region
    $region26: #{tpu_custom_call.1} parent=1 // pred_check
      _
    $region27: #{tpu_custom_call.1} parent=1 // pred_check_branch
      %67 = sbr.rel (0) target = $region29
    $region28: #{tpu_custom_call.1} parent=1 // pred_region
      _
    $region29: #{tpu_custom_call.1} parent=1 // pred_fallthru
      _
    // Predicated region
    $region30: #{tpu_custom_call.1} parent=1 // pred_check
      _
    $region31: #{tpu_custom_call.1} parent=1 // pred_check_branch
      %69 = sbr.rel (0) target = $region33
    $region32: #{tpu_custom_call.1} parent=1 // pred_region
      %70 = dma.done [#allocation3], 768
    $region33: #{tpu_custom_call.1} parent=1 // pred_fallthru
      _
    // Predicated region
    $region34: #{tpu_custom_call.1} parent=1 // pred_check
      _
    $region35: #{tpu_custom_call.1} parent=1 // pred_check_branch
      %72 = sbr.rel (0) target = $region37
    $region36: #{tpu_custom_call.1} parent=1 // pred_region
      %73 = dma.done [#allocation6], 12288
    $region37: #{tpu_custom_call.1} parent=1 // pred_fallthru
      _
    // Predicated region
    $region38: #{tpu_custom_call.1} parent=1 // pred_check
      _
    $region39: #{tpu_custom_call.1} parent=1 // pred_check_branch
      %75 = sbr.rel (0) target = $region41
    $region40: #{tpu_custom_call.1} parent=1 // pred_region
      %76 = dma.done [#allocation6], 2048
    $region41: #{tpu_custom_call.1} parent=1 // pred_fallthru
      _
    // Predicated region
    $region42: #{tpu_custom_call.1} parent=1 // pred_check
      _
    $region43: #{tpu_custom_call.1} parent=1 // pred_check_branch
      %78 = sbr.rel (0) target = $region45
    $region44: #{tpu_custom_call.1} parent=1 // pred_region
      %79 = dma.done [#allocation9], 2048
    $region45: #{tpu_custom_call.1} parent=1 // pred_fallthru
      _
    %v80 = vld [vmem:[#allocation2] sm:$0xff]
    %v81 = vld [vmem:[#allocation2 + $0x8] sm:$0xff]
    %v82 = vld [vmem:[#allocation2 + $0x10] sm:$0xff]
    %v83 = vld [vmem:[#allocation2 + $0x18] sm:$0xff]
    %v84 = vld [vmem:[#allocation2 + $0x20] sm:$0xff]
    %v85 = vld [vmem:[#allocation2 + $0x28] sm:$0xff]
    %v86 = vld [vmem:[#allocation5] sm:$0xff]
    %v87 = vld [vmem:[#allocation5 + $0x8] sm:$0xff]
    %v88 = vld [vmem:[#allocation5 + $0x10] sm:$0xff]
    %v89 = vld [vmem:[#allocation5 + $0x18] sm:$0xff]
    %v90 = vld [vmem:[#allocation5 + $0x20] sm:$0xff]
    %v91 = vld [vmem:[#allocation5 + $0x28] sm:$0xff]
    %v92 = vld [vmem:[#allocation5 + $0x30] sm:$0xff]
    %v93 = vld [vmem:[#allocation5 + $0x38] sm:$0xff]
    %v94 = vld [vmem:[#allocation5 + $0x40] sm:$0xff]
    %v95 = vld [vmem:[#allocation5 + $0x48] sm:$0xff]
    %v96 = vld [vmem:[#allocation5 + $0x50] sm:$0xff]
    %v97 = vld [vmem:[#allocation5 + $0x58] sm:$0xff]
    %v98 = vld [vmem:[#allocation5 + $0x60] sm:$0xff]
    %v99 = vld [vmem:[#allocation5 + $0x68] sm:$0xff]
    %v100 = vld [vmem:[#allocation5 + $0x70] sm:$0xff]
    %v101 = vld [vmem:[#allocation5 + $0x78] sm:$0xff]
    %v102 = vld [vmem:[#allocation5 + $0x80] sm:$0xff]
    %v103 = vld [vmem:[#allocation5 + $0x88] sm:$0xff]
    %v104 = vld [vmem:[#allocation5 + $0x90] sm:$0xff]
    %v105 = vld [vmem:[#allocation5 + $0x98] sm:$0xff]
    %v106 = vld [vmem:[#allocation5 + $0xa0] sm:$0xff]
    %v107 = vld [vmem:[#allocation5 + $0xa8] sm:$0xff]
    %v108 = vld [vmem:[#allocation5 + $0xb0] sm:$0xff]
    %v109 = vld [vmem:[#allocation5 + $0xb8] sm:$0xff]
    %v110 = vld [vmem:[#allocation5 + $0xc0] sm:$0xff]
    %v111 = vld [vmem:[#allocation5 + $0xc8] sm:$0xff]
    %v112 = vld [vmem:[#allocation5 + $0xd0] sm:$0xff]
    %v113 = vld [vmem:[#allocation5 + $0xd8] sm:$0xff]
    %v114 = vld [vmem:[#allocation5 + $0xe0] sm:$0xff]
    %v115 = vld [vmem:[#allocation5 + $0xe8] sm:$0xff]
    %v116 = vld [vmem:[#allocation5 + $0xf0] sm:$0xff]
    %v117 = vld [vmem:[#allocation5 + $0xf8] sm:$0xff]
    %v118 = vld [vmem:[#allocation5 + $0x100] sm:$0xff]
    %v119 = vld [vmem:[#allocation5 + $0x108] sm:$0xff]
    %v120 = vld [vmem:[#allocation5 + $0x110] sm:$0xff]
    %v121 = vld [vmem:[#allocation5 + $0x118] sm:$0xff]
    %v122 = vld [vmem:[#allocation5 + $0x120] sm:$0xff]
    %v123 = vld [vmem:[#allocation5 + $0x128] sm:$0xff]
    %v124 = vld [vmem:[#allocation5 + $0x130] sm:$0xff]
    %v125 = vld [vmem:[#allocation5 + $0x138] sm:$0xff]
    %v126 = vld [vmem:[#allocation5 + $0x140] sm:$0xff]
    %v127 = vld [vmem:[#allocation5 + $0x148] sm:$0xff]
    %v128 = vld [vmem:[#allocation5 + $0x150] sm:$0xff]
    %v129 = vld [vmem:[#allocation5 + $0x158] sm:$0xff]
    %v130 = vld [vmem:[#allocation5 + $0x160] sm:$0xff]
    %v131 = vld [vmem:[#allocation5 + $0x168] sm:$0xff]
    %v132 = vld [vmem:[#allocation5 + $0x170] sm:$0xff]
    %v133 = vld [vmem:[#allocation5 + $0x178] sm:$0xff]
    %v134 = vld [vmem:[#allocation5 + $0x180] sm:$0xff]
    %v135 = vld [vmem:[#allocation5 + $0x188] sm:$0xff]
    %v136 = vld [vmem:[#allocation5 + $0x190] sm:$0xff]
    %v137 = vld [vmem:[#allocation5 + $0x198] sm:$0xff]
    %v138 = vld [vmem:[#allocation5 + $0x1a0] sm:$0xff]
    %v139 = vld [vmem:[#allocation5 + $0x1a8] sm:$0xff]
    %v140 = vld [vmem:[#allocation5 + $0x1b0] sm:$0xff]
    %v141 = vld [vmem:[#allocation5 + $0x1b8] sm:$0xff]
    %v142 = vld [vmem:[#allocation5 + $0x1c0] sm:$0xff]
    %v143 = vld [vmem:[#allocation5 + $0x1c8] sm:$0xff]
    %v144 = vld [vmem:[#allocation5 + $0x1d0] sm:$0xff]
    %v145 = vld [vmem:[#allocation5 + $0x1d8] sm:$0xff]
    %v146 = vld [vmem:[#allocation5 + $0x1e0] sm:$0xff]
    %v147 = vld [vmem:[#allocation5 + $0x1e8] sm:$0xff]
    %v148 = vld [vmem:[#allocation5 + $0x1f0] sm:$0xff]
    %v149 = vld [vmem:[#allocation5 + $0x1f8] sm:$0xff]
    %v150 = vld [vmem:[#allocation5 + $0x200] sm:$0xff]
    %v151 = vld [vmem:[#allocation5 + $0x208] sm:$0xff]
    %v152 = vld [vmem:[#allocation5 + $0x210] sm:$0xff]
    %v153 = vld [vmem:[#allocation5 + $0x218] sm:$0xff]
    %v154 = vld [vmem:[#allocation5 + $0x220] sm:$0xff]
    %v155 = vld [vmem:[#allocation5 + $0x228] sm:$0xff]
    %v156 = vld [vmem:[#allocation5 + $0x230] sm:$0xff]
    %v157 = vld [vmem:[#allocation5 + $0x238] sm:$0xff]
    %v158 = vld [vmem:[#allocation5 + $0x240] sm:$0xff]
    %v159 = vld [vmem:[#allocation5 + $0x248] sm:$0xff]
    %v160 = vld [vmem:[#allocation5 + $0x250] sm:$0xff]
    %v161 = vld [vmem:[#allocation5 + $0x258] sm:$0xff]
    %v162 = vld [vmem:[#allocation5 + $0x260] sm:$0xff]
    %v163 = vld [vmem:[#allocation5 + $0x268] sm:$0xff]
    %v164 = vld [vmem:[#allocation5 + $0x270] sm:$0xff]
    %v165 = vld [vmem:[#allocation5 + $0x278] sm:$0xff]
    %v166 = vld [vmem:[#allocation5 + $0x280] sm:$0xff]
    %v167 = vld [vmem:[#allocation5 + $0x288] sm:$0xff]
    %v168 = vld [vmem:[#allocation5 + $0x290] sm:$0xff]
    %v169 = vld [vmem:[#allocation5 + $0x298] sm:$0xff]
    %v170 = vld [vmem:[#allocation5 + $0x2a0] sm:$0xff]
    %v171 = vld [vmem:[#allocation5 + $0x2a8] sm:$0xff]
    %v172 = vld [vmem:[#allocation5 + $0x2b0] sm:$0xff]
    %v173 = vld [vmem:[#allocation5 + $0x2b8] sm:$0xff]
    %v174 = vld [vmem:[#allocation5 + $0x2c0] sm:$0xff]
    %v175 = vld [vmem:[#allocation5 + $0x2c8] sm:$0xff]
    %v176 = vld [vmem:[#allocation5 + $0x2d0] sm:$0xff]
    %v177 = vld [vmem:[#allocation5 + $0x2d8] sm:$0xff]
    %v178 = vld [vmem:[#allocation5 + $0x2e0] sm:$0xff]
    %v179 = vld [vmem:[#allocation5 + $0x2e8] sm:$0xff]
    %v180 = vld [vmem:[#allocation5 + $0x2f0] sm:$0xff]
    %v181 = vld [vmem:[#allocation5 + $0x2f8] sm:$0xff]
    %v182 = vld [vmem:[%s2] sm:$0x1]
    %v184 = vlaneseq
    %v185 = vshrl.u32 %v184, 7
    %v186 = vsub.s32 0, %v185
    %v187 = vrot.slane %v182, %v186
    %189 = vmatprep.subr.mxu0 0.0
    %190 = vmatpush1.msra.mxu0 %v86
    %191 = vmatprep.subr.mxu0 0.0
    %192 = vmatpush1.msra.mxu0 %v87
    %193 = vmatprep.subr.mxu0 0.0
    %194 = vmatpush1.msra.mxu0 %v88
    %195 = vmatprep.subr.mxu0 0.0
    %196 = vmatpush1.msra.mxu0 %v89
    %197 = vmatprep.subr.mxu0 0.0
    %198 = vmatpush1.msra.mxu0 %v90
    %199 = vmatprep.subr.mxu0 0.0
    %200 = vmatpush1.msra.mxu0 %v91
    %201 = vmatprep.subr.mxu0 0.0
    %202 = vmatpush1.msra.mxu0 %v92
    %203 = vmatprep.subr.mxu0 0.0
    %204 = vmatpush1.msra.mxu0 %v93
    %205 = vmatprep.subr.mxu0 0.0
    %206 = vmatpush1.msra.mxu0 %v94
    %207 = vmatprep.subr.mxu0 0.0
    %208 = vmatpush1.msra.mxu0 %v95
    %209 = vmatprep.subr.mxu0 0.0
    %210 = vmatpush1.msra.mxu0 %v96
    %211 = vmatprep.subr.mxu0 0.0
    %212 = vmatpush1.msra.mxu0 %v97
    %213 = vmatprep.subr.mxu0 0.0
    %214 = vmatpush1.msra.mxu0 %v98
    %215 = vmatprep.subr.mxu0 0.0
    %216 = vmatpush1.msra.mxu0 %v99
    %217 = vmatprep.subr.mxu0 0.0
    %218 = vmatpush1.msra.mxu0 %v100
    %219 = vmatprep.subr.mxu0 0.0
    %220 = vmatpush1.msra.mxu0 %v101
    %221 = vmatprep.subr.mxu0 0.0
    %222 = vmatpush1.msra.mxu0 %v102
    %223 = vmatprep.subr.mxu0 0.0
    %224 = vmatpush1.msra.mxu0 %v103
    %225 = vmatprep.subr.mxu0 0.0
    %226 = vmatpush1.msra.mxu0 %v104
    %227 = vmatprep.subr.mxu0 0.0
    %228 = vmatpush1.msra.mxu0 %v105
    %229 = vmatprep.subr.mxu0 0.0
    %230 = vmatpush1.msra.mxu0 %v106
    %231 = vmatprep.subr.mxu0 0.0
    %232 = vmatpush1.msra.mxu0 %v107
    %233 = vmatprep.subr.mxu0 0.0
    %234 = vmatpush1.msra.mxu0 %v108
    %235 = vmatprep.subr.mxu0 0.0
    %236 = vmatpush1.msra.mxu0 %v109
    %237 = vmatprep.subr.mxu0 0.0
    %238 = vmatpush1.msra.mxu0 %v110
    %239 = vmatprep.subr.mxu0 0.0
    %240 = vmatpush1.msra.mxu0 %v111
    %241 = vmatprep.subr.mxu0 0.0
    %242 = vmatpush1.msra.mxu0 %v112
    %243 = vmatprep.subr.mxu0 0.0
    %244 = vmatpush1.msra.mxu0 %v113
    %245 = vmatprep.subr.mxu0 0.0
    %246 = vmatpush1.msra.mxu0 %v114
    %247 = vmatprep.subr.mxu0 0.0
    %248 = vmatpush1.msra.mxu0 %v115
    %249 = vmatprep.subr.mxu0 0.0
    %250 = vmatpush1.msra.mxu0 %v116
    %251 = vmatprep.subr.mxu0 0.0
    %252 = vmatpush1.msra.mxu0 %v117
    %253 = vmatprep.mubr.f32.mxu0 %v81
    %254 = vmatmul.mubr.f32.gmra.mrb[0].mxu0 %v80
    %v255 = vpop.f32.mrb[0].mxu0
    %v256 = vadd.f32 %v187, %v255
    %v257 = vpop.f32.mrb[0].mxu0
    %258 = vdwg.mxu0
    %259 = vmatprep.subr.mxu0 0.0
    %260 = vmatpush1.msra.mxu0 %v118
    %261 = vmatprep.subr.mxu0 0.0
    %262 = vmatpush1.msra.mxu0 %v119
    %263 = vmatprep.subr.mxu0 0.0
    %264 = vmatpush1.msra.mxu0 %v120
    %265 = vmatprep.subr.mxu0 0.0
    %266 = vmatpush1.msra.mxu0 %v121
    %267 = vmatprep.subr.mxu0 0.0
    %268 = vmatpush1.msra.mxu0 %v122
    %269 = vmatprep.subr.mxu0 0.0
    %270 = vmatpush1.msra.mxu0 %v123
    %271 = vmatprep.subr.mxu0 0.0
    %272 = vmatpush1.msra.mxu0 %v124
    %273 = vmatprep.subr.mxu0 0.0
    %274 = vmatpush1.msra.mxu0 %v125
    %275 = vmatprep.subr.mxu0 0.0
    %276 = vmatpush1.msra.mxu0 %v126
    %277 = vmatprep.subr.mxu0 0.0
    %278 = vmatpush1.msra.mxu0 %v127
    %279 = vmatprep.subr.mxu0 0.0
    %280 = vmatpush1.msra.mxu0 %v128
    %281 = vmatprep.subr.mxu0 0.0
    %282 = vmatpush1.msra.mxu0 %v129
    %283 = vmatprep.subr.mxu0 0.0
    %284 = vmatpush1.msra.mxu0 %v130
    %285 = vmatprep.subr.mxu0 0.0
    %286 = vmatpush1.msra.mxu0 %v131
    %287 = vmatprep.subr.mxu0 0.0
    %288 = vmatpush1.msra.mxu0 %v132
    %289 = vmatprep.subr.mxu0 0.0
    %290 = vmatpush1.msra.mxu0 %v133
    %291 = vmatprep.subr.mxu0 0.0
    %292 = vmatpush1.msra.mxu0 %v134
    %293 = vmatprep.subr.mxu0 0.0
    %294 = vmatpush1.msra.mxu0 %v135
    %295 = vmatprep.subr.mxu0 0.0
    %296 = vmatpush1.msra.mxu0 %v136
    %297 = vmatprep.subr.mxu0 0.0
    %298 = vmatpush1.msra.mxu0 %v137
    %299 = vmatprep.subr.mxu0 0.0
    %300 = vmatpush1.msra.mxu0 %v138
    %301 = vmatprep.subr.mxu0 0.0
    %302 = vmatpush1.msra.mxu0 %v139
    %303 = vmatprep.subr.mxu0 0.0
    %304 = vmatpush1.msra.mxu0 %v140
    %305 = vmatprep.subr.mxu0 0.0
    %306 = vmatpush1.msra.mxu0 %v141
    %307 = vmatprep.subr.mxu0 0.0
    %308 = vmatpush1.msra.mxu0 %v142
    %309 = vmatprep.subr.mxu0 0.0
    %310 = vmatpush1.msra.mxu0 %v143
    %311 = vmatprep.subr.mxu0 0.0
    %312 = vmatpush1.msra.mxu0 %v144
    %313 = vmatprep.subr.mxu0 0.0
    %314 = vmatpush1.msra.mxu0 %v145
    %315 = vmatprep.subr.mxu0 0.0
    %316 = vmatpush1.msra.mxu0 %v146
    %317 = vmatprep.subr.mxu0 0.0
    %318 = vmatpush1.msra.mxu0 %v147
    %319 = vmatprep.subr.mxu0 0.0
    %320 = vmatpush1.msra.mxu0 %v148
    %321 = vmatprep.subr.mxu0 0.0
    %322 = vmatpush1.msra.mxu0 %v149
    %323 = vmatprep.mubr.f32.mxu0 %v83
    %324 = vmatmul.mubr.f32.gmra.mrb[0].mxu0 %v82
    %v325 = vpop.f32.mrb[0].mxu0
    %v326 = vadd.f32 %v256, %v325
    %v327 = vpop.f32.mrb[0].mxu0
    %328 = vdwg.mxu0
    %329 = vmatprep.subr.mxu0 0.0
    %330 = vmatpush1.msra.mxu0 %v150
    %331 = vmatprep.subr.mxu0 0.0
    %332 = vmatpush1.msra.mxu0 %v151
    %333 = vmatprep.subr.mxu0 0.0
    %334 = vmatpush1.msra.mxu0 %v152
    %335 = vmatprep.subr.mxu0 0.0
    %336 = vmatpush1.msra.mxu0 %v153
    %337 = vmatprep.subr.mxu0 0.0
    %338 = vmatpush1.msra.mxu0 %v154
    %339 = vmatprep.subr.mxu0 0.0
    %340 = vmatpush1.msra.mxu0 %v155
    %341 = vmatprep.subr.mxu0 0.0
    %342 = vmatpush1.msra.mxu0 %v156
    %343 = vmatprep.subr.mxu0 0.0
    %344 = vmatpush1.msra.mxu0 %v157
    %345 = vmatprep.subr.mxu0 0.0
    %346 = vmatpush1.msra.mxu0 %v158
    %347 = vmatprep.subr.mxu0 0.0
    %348 = vmatpush1.msra.mxu0 %v159
    %349 = vmatprep.subr.mxu0 0.0
    %350 = vmatpush1.msra.mxu0 %v160
    %351 = vmatprep.subr.mxu0 0.0
    %352 = vmatpush1.msra.mxu0 %v161
    %353 = vmatprep.subr.mxu0 0.0
    %354 = vmatpush1.msra.mxu0 %v162
    %355 = vmatprep.subr.mxu0 0.0
    %356 = vmatpush1.msra.mxu0 %v163
    %357 = vmatprep.subr.mxu0 0.0
    %358 = vmatpush1.msra.mxu0 %v164
    %359 = vmatprep.subr.mxu0 0.0
    %360 = vmatpush1.msra.mxu0 %v165
    %361 = vmatprep.subr.mxu0 0.0
    %362 = vmatpush1.msra.mxu0 %v166
    %363 = vmatprep.subr.mxu0 0.0
    %364 = vmatpush1.msra.mxu0 %v167
    %365 = vmatprep.subr.mxu0 0.0
    %366 = vmatpush1.msra.mxu0 %v168
    %367 = vmatprep.subr.mxu0 0.0
    %368 = vmatpush1.msra.mxu0 %v169
    %369 = vmatprep.subr.mxu0 0.0
    %370 = vmatpush1.msra.mxu0 %v170
    %371 = vmatprep.subr.mxu0 0.0
    %372 = vmatpush1.msra.mxu0 %v171
    %373 = vmatprep.subr.mxu0 0.0
    %374 = vmatpush1.msra.mxu0 %v172
    %375 = vmatprep.subr.mxu0 0.0
    %376 = vmatpush1.msra.mxu0 %v173
    %377 = vmatprep.subr.mxu0 0.0
    %378 = vmatpush1.msra.mxu0 %v174
    %379 = vmatprep.subr.mxu0 0.0
    %380 = vmatpush1.msra.mxu0 %v175
    %381 = vmatprep.subr.mxu0 0.0
    %382 = vmatpush1.msra.mxu0 %v176
    %383 = vmatprep.subr.mxu0 0.0
    %384 = vmatpush1.msra.mxu0 %v177
    %385 = vmatprep.subr.mxu0 0.0
    %386 = vmatpush1.msra.mxu0 %v178
    %387 = vmatprep.subr.mxu0 0.0
    %388 = vmatpush1.msra.mxu0 %v179
    %389 = vmatprep.subr.mxu0 0.0
    %390 = vmatpush1.msra.mxu0 %v180
    %391 = vmatprep.subr.mxu0 0.0
    %392 = vmatpush1.msra.mxu0 %v181
    %393 = vmatprep.mubr.f32.mxu0 %v85
    %394 = vmatmul.mubr.f32.gmra.mrb[0].mxu0 %v84
    %v395 = vpop.f32.mrb[0].mxu0
    %v396 = vadd.f32 %v326, %v395
    %v397 = vpop.f32.mrb[0].mxu0
    %398 = vdwg.mxu0
    %v399 = vmax.f32 %v396, 0.0
    %v400 = vld [vmem:[#allocation7] sm:$0xff]
    %v401 = vld [vmem:[#allocation7 + $0x8] sm:$0xff]
    %v402 = vld [vmem:[#allocation7 + $0x10] sm:$0xff]
    %v403 = vld [vmem:[#allocation7 + $0x18] sm:$0xff]
    %v404 = vld [vmem:[#allocation7 + $0x20] sm:$0xff]
    %v405 = vld [vmem:[#allocation7 + $0x28] sm:$0xff]
    %v406 = vld [vmem:[#allocation7 + $0x30] sm:$0xff]
    %v407 = vld [vmem:[#allocation7 + $0x38] sm:$0xff]
    %v408 = vld [vmem:[#allocation7 + $0x40] sm:$0xff]
    %v409 = vld [vmem:[#allocation7 + $0x48] sm:$0xff]
    %v410 = vld [vmem:[#allocation7 + $0x50] sm:$0xff]
    %v411 = vld [vmem:[#allocation7 + $0x58] sm:$0xff]
    %v412 = vld [vmem:[#allocation7 + $0x60] sm:$0xff]
    %v413 = vld [vmem:[#allocation7 + $0x68] sm:$0xff]
    %v414 = vld [vmem:[#allocation7 + $0x70] sm:$0xff]
    %v415 = vld [vmem:[#allocation7 + $0x78] sm:$0xff]
    %v416 = vld [vmem:[%s4] sm:$0x1]
    %v418 = vlaneseq
    %v419 = vshrl.u32 %v418, 7
    %v420 = vsub.s32 0, %v419
    %v421 = vrot.slane %v416, %v420
    %423 = vmatprep.subr.mxu0 0.0
    %424 = vmatpush1.msra.mxu0 %v400
    %425 = vmatprep.subr.mxu0 0.0
    %426 = vmatpush1.msra.mxu0 %v401
    %427 = vmatprep.subr.mxu0 0.0
    %428 = vmatpush1.msra.mxu0 %v402
    %429 = vmatprep.subr.mxu0 0.0
    %430 = vmatpush1.msra.mxu0 %v403
    %431 = vmatprep.subr.mxu0 0.0
    %432 = vmatpush1.msra.mxu0 %v404
    %433 = vmatprep.subr.mxu0 0.0
    %434 = vmatpush1.msra.mxu0 %v405
    %435 = vmatprep.subr.mxu0 0.0
    %436 = vmatpush1.msra.mxu0 %v406
    %437 = vmatprep.subr.mxu0 0.0
    %438 = vmatpush1.msra.mxu0 %v407
    %439 = vmatprep.subr.mxu0 0.0
    %440 = vmatpush1.msra.mxu0 %v408
    %441 = vmatprep.subr.mxu0 0.0
    %442 = vmatpush1.msra.mxu0 %v409
    %443 = vmatprep.subr.mxu0 0.0
    %444 = vmatpush1.msra.mxu0 %v410
    %445 = vmatprep.subr.mxu0 0.0
    %446 = vmatpush1.msra.mxu0 %v411
    %447 = vmatprep.subr.mxu0 0.0
    %448 = vmatpush1.msra.mxu0 %v412
    %449 = vmatprep.subr.mxu0 0.0
    %450 = vmatpush1.msra.mxu0 %v413
    %451 = vmatprep.subr.mxu0 0.0
    %452 = vmatpush1.msra.mxu0 %v414
    %453 = vmatprep.subr.mxu0 0.0
    %454 = vmatpush1.msra.mxu0 %v415
    %455 = vmatprep.subr.mxu0 0.0
    %456 = vmatpush1.msra.mxu0 0.0
    %457 = vmatprep.subr.mxu0 0.0
    %458 = vmatpush1.msra.mxu0 0.0
    %459 = vmatprep.subr.mxu0 0.0
    %460 = vmatpush1.msra.mxu0 0.0
    %461 = vmatprep.subr.mxu0 0.0
    %462 = vmatpush1.msra.mxu0 0.0
    %463 = vmatprep.subr.mxu0 0.0
    %464 = vmatpush1.msra.mxu0 0.0
    %465 = vmatprep.subr.mxu0 0.0
    %466 = vmatpush1.msra.mxu0 0.0
    %467 = vmatprep.subr.mxu0 0.0
    %468 = vmatpush1.msra.mxu0 0.0
    %469 = vmatprep.subr.mxu0 0.0
    %470 = vmatpush1.msra.mxu0 0.0
    %471 = vmatprep.subr.mxu0 0.0
    %472 = vmatpush1.msra.mxu0 0.0
    %473 = vmatprep.subr.mxu0 0.0
    %474 = vmatpush1.msra.mxu0 0.0
    %475 = vmatprep.subr.mxu0 0.0
    %476 = vmatpush1.msra.mxu0 0.0
    %477 = vmatprep.subr.mxu0 0.0
    %478 = vmatpush1.msra.mxu0 0.0
    %479 = vmatprep.subr.mxu0 0.0
    %480 = vmatpush1.msra.mxu0 0.0
    %481 = vmatprep.subr.mxu0 0.0
    %482 = vmatpush1.msra.mxu0 0.0
    %483 = vmatprep.subr.mxu0 0.0
    %484 = vmatpush1.msra.mxu0 0.0
    %485 = vmatprep.subr.mxu0 0.0
    %486 = vmatpush1.msra.mxu0 0.0
    %487 = vmatprep.mubr.f32.mxu0 0.0
    %488 = vmatmul.mubr.f32.gmra.mrb[0].mxu0 %v399
    %v489 = vpop.f32.mrb[0].mxu0
    %v490 = vadd.f32 %v421, %v489
    %v491 = vpop.f32.mrb[0].mxu0
    %492 = vdwg.mxu0
    %v493 = vmax.f32 %v490, 0.0
    %v494 = vld [vmem:[#allocation8] sm:$0xff]
    %v495 = vld [vmem:[#allocation8 + $0x8] sm:$0xff]
    %v496 = vld [vmem:[#allocation8 + $0x10] sm:$0xff]
    %v497 = vld [vmem:[#allocation8 + $0x18] sm:$0xff]
    %v498 = vld [vmem:[#allocation8 + $0x20] sm:$0xff]
    %v499 = vld [vmem:[#allocation8 + $0x28] sm:$0xff]
    %v500 = vld [vmem:[#allocation8 + $0x30] sm:$0xff]
    %v501 = vld [vmem:[#allocation8 + $0x38] sm:$0xff]
    %v502 = vld [vmem:[#allocation8 + $0x40] sm:$0xff]
    %v503 = vld [vmem:[#allocation8 + $0x48] sm:$0xff]
    %v504 = vld [vmem:[#allocation8 + $0x50] sm:$0xff]
    %v505 = vld [vmem:[#allocation8 + $0x58] sm:$0xff]
    %v506 = vld [vmem:[#allocation8 + $0x60] sm:$0xff]
    %v507 = vld [vmem:[#allocation8 + $0x68] sm:$0xff]
    %v508 = vld [vmem:[#allocation8 + $0x70] sm:$0xff]
    %v509 = vld [vmem:[#allocation8 + $0x78] sm:$0xff]
    %v510 = vld [vmem:[%s6] sm:$0x1]
    %v512 = vlaneseq
    %v513 = vshrl.u32 %v512, 7
    %v514 = vsub.s32 0, %v513
    %v515 = vrot.slane %v510, %v514
    %517 = vmatprep.subr.mxu0 0.0
    %518 = vmatpush1.msra.mxu0 %v494
    %519 = vmatprep.subr.mxu0 0.0
    %520 = vmatpush1.msra.mxu0 %v495
    %521 = vmatprep.subr.mxu0 0.0
    %522 = vmatpush1.msra.mxu0 %v496
    %523 = vmatprep.subr.mxu0 0.0
    %524 = vmatpush1.msra.mxu0 %v497
    %525 = vmatprep.subr.mxu0 0.0
    %526 = vmatpush1.msra.mxu0 %v498
    %527 = vmatprep.subr.mxu0 0.0
    %528 = vmatpush1.msra.mxu0 %v499
    %529 = vmatprep.subr.mxu0 0.0
    %530 = vmatpush1.msra.mxu0 %v500
    %531 = vmatprep.subr.mxu0 0.0
    %532 = vmatpush1.msra.mxu0 %v501
    %533 = vmatprep.subr.mxu0 0.0
    %534 = vmatpush1.msra.mxu0 %v502
    %535 = vmatprep.subr.mxu0 0.0
    %536 = vmatpush1.msra.mxu0 %v503
    %537 = vmatprep.subr.mxu0 0.0
    %538 = vmatpush1.msra.mxu0 %v504
    %539 = vmatprep.subr.mxu0 0.0
    %540 = vmatpush1.msra.mxu0 %v505
    %541 = vmatprep.subr.mxu0 0.0
    %542 = vmatpush1.msra.mxu0 %v506
    %543 = vmatprep.subr.mxu0 0.0
    %544 = vmatpush1.msra.mxu0 %v507
    %545 = vmatprep.subr.mxu0 0.0
    %546 = vmatpush1.msra.mxu0 %v508
    %547 = vmatprep.subr.mxu0 0.0
    %548 = vmatpush1.msra.mxu0 %v509
    %549 = vmatprep.subr.mxu0 0.0
    %550 = vmatpush1.msra.mxu0 0.0
    %551 = vmatprep.subr.mxu0 0.0
    %552 = vmatpush1.msra.mxu0 0.0
    %553 = vmatprep.subr.mxu0 0.0
    %554 = vmatpush1.msra.mxu0 0.0
    %555 = vmatprep.subr.mxu0 0.0
    %556 = vmatpush1.msra.mxu0 0.0
    %557 = vmatprep.subr.mxu0 0.0
    %558 = vmatpush1.msra.mxu0 0.0
    %559 = vmatprep.subr.mxu0 0.0
    %560 = vmatpush1.msra.mxu0 0.0
    %561 = vmatprep.subr.mxu0 0.0
    %562 = vmatpush1.msra.mxu0 0.0
    %563 = vmatprep.subr.mxu0 0.0
    %564 = vmatpush1.msra.mxu0 0.0
    %565 = vmatprep.subr.mxu0 0.0
    %566 = vmatpush1.msra.mxu0 0.0
    %567 = vmatprep.subr.mxu0 0.0
    %568 = vmatpush1.msra.mxu0 0.0
    %569 = vmatprep.subr.mxu0 0.0
    %570 = vmatpush1.msra.mxu0 0.0
    %571 = vmatprep.subr.mxu0 0.0
    %572 = vmatpush1.msra.mxu0 0.0
    %573 = vmatprep.subr.mxu0 0.0
    %574 = vmatpush1.msra.mxu0 0.0
    %575 = vmatprep.subr.mxu0 0.0
    %576 = vmatpush1.msra.mxu0 0.0
    %577 = vmatprep.subr.mxu0 0.0
    %578 = vmatpush1.msra.mxu0 0.0
    %579 = vmatprep.subr.mxu0 0.0
    %580 = vmatpush1.msra.mxu0 0.0
    %581 = vmatprep.mubr.f32.mxu0 0.0
    %582 = vmatmul.mubr.f32.gmra.mrb[0].mxu0 %v493
    %v583 = vpop.f32.mrb[0].mxu0
    %v584 = vadd.f32 %v515, %v583
    %v585 = vpop.f32.mrb[0].mxu0
    %586 = vdwg.mxu0
    %587 = vst [vmem:[#allocation10] sm:$0xff] %v584
    // Predicated region
    $region46: #{tpu_custom_call.1} parent=1 // pred_check
      _
    $region47: #{tpu_custom_call.1} parent=1 // pred_check_branch
      %589 = sbr.rel (0) target = $region49
    $region48: #{tpu_custom_call.1} parent=1 // pred_region
      %s591 = ssub.s32 128, 128
      %592 = vsyncadd [#allocation4], %s591
      %s594 = sshll.u32 [#allocation10], 4
      %s595 = int_to_ptr.vmem [resolvable:$true] %s594
      %597 = dma.vmem_to_hbm [thread:$0]  %s595, 128, %s7, [#allocation4]
    $region49: #{tpu_custom_call.1} parent=1 // pred_fallthru
      _
    // Predicated region
    $region50: #{tpu_custom_call.1} parent=1 // pred_check
      _
    $region51: #{tpu_custom_call.1} parent=1 // pred_check_branch
      %599 = sbr.rel (0) target = $region53
    $region52: #{tpu_custom_call.1} parent=1 // pred_region
      %600 = dma.done [#allocation4], 128
    $region53: #{tpu_custom_call.1} parent=1 // pred_fallthru
      _
    %601 = vsyncpa [#allocation3], 1
    %602 = vsyncpa [#allocation6], 1
    %603 = vsyncpa [#allocation9], 1
    %604 = vsyncpa [#allocation4], 1

</llo_original>
